<compile_context>
chip_gen: v7x
topology: tpu7x:2x2x1
jax: 0.10.0
libtpu: 0.0.40
codegen_flags: <defaults>
</compile_context>

<pallas_src>
import jax
import jax.numpy as jnp
from jax.experimental import pallas as pl
from jax.experimental.pallas import tpu as pltpu

ROW_ALIGN = 16   # sublane alignment valid for both f32 (8) and bf16 (16) tiles
OUT_PAD = 16     # classes padded 9 -> 16 (block == full last dim -> legal)


def policy_kernel(x_ref, w1_ref, b1_ref, w2_ref, b2_ref, o_ref):
    # x : (TB, IN)       bf16 (or f32)
    # w1: (IN, H)        bf16
    # b1: (1, H)         f32
    # w2: (H, OUT_PAD)   bf16, zero-padded columns
    # b2: (1, OUT_PAD)   f32, padded columns = -1e30 (finite)
    # o : (TB, OUT_PAD)  bf16
    h = jnp.dot(x_ref[...], w1_ref[...], preferred_element_type=jnp.float32)
    h = jnp.maximum(h + b1_ref[...], 0.0)

    z = jnp.dot(h.astype(w2_ref.dtype), w2_ref[...],
                preferred_element_type=jnp.float32) + b2_ref[...]

    # Numerically stable softmax over the 16 padded lanes.  Padded lanes hold
    # -1e30 logits (kept in f32), so exp(...) == 0 there and the denominator
    # is unpolluted.  Exact division keeps row sums == 1 to rounding.
    z = z - jnp.max(z, axis=-1, keepdims=True)
    e = jnp.exp(z)
    denom = jnp.sum(e, axis=-1, keepdims=True)
    o_ref[...] = (e / denom).astype(o_ref.dtype)


def _round_up(v, m):
    return ((v + m - 1) // m) * m


def policy_forward(x, w1, b1, w2, b2, *, block_b=4096, use_bf16=True):
    """x: (B, 27); w1: (27, 64); b1: (1, 64); w2: (64, 9); b2: (1, 9)."""
    B, in_features = x.shape
    hidden = w1.shape[1]
    out_features = w2.shape[1]
    assert w1.shape == (in_features, hidden)
    assert b1.shape == (1, hidden)
    assert w2.shape == (hidden, out_features)
    assert b2.shape == (1, out_features)
    assert out_features <= OUT_PAD

    compute_dtype = jnp.bfloat16 if use_bf16 else jnp.float32
    out_dtype = jnp.bfloat16 if use_bf16 else jnp.float32

    # --- Narrow class padding (9 -> 16) ---------------------------------------
    w2p = (jnp.zeros((hidden, OUT_PAD), jnp.float32)
           .at[:, :out_features].set(w2.astype(jnp.float32))
           .astype(compute_dtype))
    # Padded bias stays f32: -1e30 is finite there and exp() of it is exactly 0.
    b2p = (jnp.full((1, OUT_PAD), -1e30, jnp.float32)
           .at[:, :out_features].set(b2.astype(jnp.float32)))
    w1c = w1.astype(compute_dtype)
    b1c = b1.astype(jnp.float32)

    # --- Batch tiling ----------------------------------------------------------
    # Big tiles amortize per-step overhead; cap at ceil(B/2) so the grid keeps
    # >= 2 steps (keeps both v7x TensorCores busy via "parallel" semantics).
    tb = min(_round_up(max(block_b, ROW_ALIGN), ROW_ALIGN),
             _round_up(pl.cdiv(B, 2), ROW_ALIGN))
    if B % tb == 0:
        b_pad = B
        xp = x.astype(compute_dtype)                       # single fused cast pass
    else:
        b_pad = _round_up(B, tb)
        xp = (jnp.zeros((b_pad, in_features), compute_dtype)
              .at[:B].set(x.astype(compute_dtype)))        # fused pad + cast pass

    grid = (b_pad // tb,)

    out = pl.pallas_call(
        policy_kernel,
        out_shape=jax.ShapeDtypeStruct((b_pad, OUT_PAD), out_dtype),
        grid=grid,
        in_specs=[
            pl.BlockSpec((tb, in_features), lambda i: (i, 0)),       # x tile
            pl.BlockSpec((in_features, hidden), lambda i: (0, 0)),   # w1 (resident)
            pl.BlockSpec((1, hidden), lambda i: (0, 0)),             # b1 (resident)
            pl.BlockSpec((hidden, OUT_PAD), lambda i: (0, 0)),       # w2 (resident)
            pl.BlockSpec((1, OUT_PAD), lambda i: (0, 0)),            # b2 (resident)
        ],
        out_specs=pl.BlockSpec((tb, OUT_PAD), lambda i: (i, 0)),
        compiler_params=pltpu.CompilerParams(
            dimension_semantics=("parallel",)),
    )(xp, w1c, b1c, w2p, b2p)

    # Row slice + widen to f32 in one fused XLA pass (reads 16 bf16 cols/row).
    return out[:B, :out_features].astype(jnp.float32)


def init_params(key, input_size=27, hidden_size=64, output_size=9):
    """Deterministic synthetic init (PyTorch-Linear-like uniform bounds)."""
    k1, k2, k3, k4 = jax.random.split(key, 4)
    bound1 = 1.0 / (input_size ** 0.5)
    bound2 = 1.0 / (hidden_size ** 0.5)
    w1 = jax.random.uniform(k1, (input_size, hidden_size), jnp.float32,
                            minval=-bound1, maxval=bound1)
    b1 = jax.random.uniform(k2, (1, hidden_size), jnp.float32,
                            minval=-bound1, maxval=bound1)
    w2 = jax.random.uniform(k3, (hidden_size, output_size), jnp.float32,
                            minval=-bound2, maxval=bound2)
    b2 = jax.random.uniform(k4, (1, output_size), jnp.float32,
                            minval=-bound2, maxval=bound2)
    return w1, b1, w2, b2


def reference(x, w1, b1, w2, b2):
    h = jnp.maximum(x @ w1 + b1, 0.0)
    return jax.nn.softmax(h @ w2 + b2, axis=1)


if __name__ == "__main__":
    key = jax.random.PRNGKey(0)
    k_x, k_x2, k_p = jax.random.split(key, 3)

    input_size, hidden_size, output_size = 27, 64, 9
    w1, b1, w2, b2 = init_params(k_p, input_size, hidden_size, output_size)

    # Small single-block case (batch = 8, ragged vs. tb=16 -> padded rows).
    x_small = jax.random.normal(k_x, (8, input_size), dtype=jnp.float32)
    out_small = jax.block_until_ready(policy_forward(x_small, w1, b1, w2, b2))
    ref_small = reference(x_small, w1, b1, w2, b2)
    assert out_small.shape == (8, output_size)
    assert out_small.dtype == jnp.float32
    # bf16 MXU operands + bf16 kernel output -> relaxed elementwise tolerance.
    assert jnp.allclose(out_small, ref_small, atol=2e-2, rtol=2e-2)
    # Exact softmax division; only bf16 output rounding perturbs the row sums.
    assert jnp.allclose(jnp.sum(out_small, axis=1), 1.0, atol=1e-2)

    # Multi-step grid with ragged batch (200 rows, 64-row tiles -> 4 steps).
    x_big = jax.random.normal(k_x2, (200, input_size), dtype=jnp.float32)
    out_big = jax.block_until_ready(
        policy_forward(x_big, w1, b1, w2, b2, block_b=64))
    ref_big = reference(x_big, w1, b1, w2, b2)
    assert out_big.shape == (200, output_size)
    assert jnp.allclose(out_big, ref_big, atol=2e-2, rtol=2e-2)
    assert jnp.allclose(jnp.sum(out_big, axis=1), 1.0, atol=1e-2)

    print("KERNEL_OK")
</pallas_src>

<mosaic_0001>
module attributes {stable_mosaic.version = 11 : i64} {
  func.func @policy_kernel(%arg0: i32, %arg1: memref<16x27xbf16, #tpu.memory_space<vmem>>, %arg2: memref<27x64xbf16, #tpu.memory_space<vmem>>, %arg3: memref<1x64xf32, #tpu.memory_space<vmem>>, %arg4: memref<64x16xbf16, #tpu.memory_space<vmem>>, %arg5: memref<1x16xf32, #tpu.memory_space<vmem>>, %arg6: memref<16x16xbf16, #tpu.memory_space<vmem>>) attributes {dimension_semantics = [#tpu.dimension_semantics<parallel>], iteration_bounds = array<i64: 1>, scalar_prefetch = 0 : i64, scratch_operands = 0 : i64, tpu.core_type = #tpu.core_type<tc>, window_params = [{transform_indices = @transform_0, window_bounds = array<i64: 16, 27>}, {pipeline_mode = #tpu.pipeline_mode<synchronous>, transform_indices = @transform_1, window_bounds = array<i64: 27, 64>}, {pipeline_mode = #tpu.pipeline_mode<synchronous>, transform_indices = @transform_2, window_bounds = array<i64: 1, 64>}, {pipeline_mode = #tpu.pipeline_mode<synchronous>, transform_indices = @transform_3, window_bounds = array<i64: 64, 16>}, {pipeline_mode = #tpu.pipeline_mode<synchronous>, transform_indices = @transform_4, window_bounds = array<i64: 1, 16>}, {transform_indices = @transform_5, window_bounds = array<i64: 16, 16>}]} {
    %c0 = arith.constant 0 : index
    %c0_0 = arith.constant 0 : index
    %0 = vector.load %arg1[%c0, %c0_0] : memref<16x27xbf16, #tpu.memory_space<vmem>>, vector<16x27xbf16>
    %c0_1 = arith.constant 0 : index
    %c0_2 = arith.constant 0 : index
    %1 = vector.load %arg2[%c0_1, %c0_2] : memref<27x64xbf16, #tpu.memory_space<vmem>>, vector<27x64xbf16>
    %cst = arith.constant dense<0.000000e+00> : vector<16x64xf32>
    %2 = tpu.matmul %0, %1, %cst {dimension_numbers = #tpu.dot_dimension_numbers<[1], [0], [0], [1], [0, 0, 1, 1], [], []>} : vector<16x27xbf16>, vector<27x64xbf16>, vector<16x64xf32> -> vector<16x64xf32>
    %c0_3 = arith.constant 0 : index
    %c0_4 = arith.constant 0 : index
    %3 = vector.load %arg3[%c0_3, %c0_4] : memref<1x64xf32, #tpu.memory_space<vmem>>, vector<1x64xf32>
    %4 = vector.broadcast %3 : vector<1x64xf32> to vector<16x64xf32>
    %5 = arith.addf %2, %4 : vector<16x64xf32>
    %cst_5 = arith.constant 0.000000e+00 : f32
    %6 = vector.broadcast %cst_5 : f32 to vector<16x64xf32>
    %7 = arith.maximumf %5, %6 : vector<16x64xf32>
    %8 = arith.truncf %7 : vector<16x64xf32> to vector<16x64xbf16>
    %c0_6 = arith.constant 0 : index
    %c0_7 = arith.constant 0 : index
    %9 = vector.load %arg4[%c0_6, %c0_7] : memref<64x16xbf16, #tpu.memory_space<vmem>>, vector<64x16xbf16>
    %cst_8 = arith.constant dense<0.000000e+00> : vector<16x16xf32>
    %10 = tpu.matmul %8, %9, %cst_8 {dimension_numbers = #tpu.dot_dimension_numbers<[1], [0], [0], [1], [0, 0, 1, 1], [], []>} : vector<16x64xbf16>, vector<64x16xbf16>, vector<16x16xf32> -> vector<16x16xf32>
    %c0_9 = arith.constant 0 : index
    %c0_10 = arith.constant 0 : index
    %11 = vector.load %arg5[%c0_9, %c0_10] : memref<1x16xf32, #tpu.memory_space<vmem>>, vector<1x16xf32>
    %12 = vector.broadcast %11 : vector<1x16xf32> to vector<16x16xf32>
    %13 = arith.addf %10, %12 : vector<16x16xf32>
    %cst_11 = arith.constant dense<0xFF800000> : vector<16xf32>
    %14 = vector.multi_reduction <maximumf>, %13, %cst_11 [1] : vector<16x16xf32> to vector<16xf32>
    %15 = vector.shape_cast %14 : vector<16xf32> to vector<16x1xf32>
    %16 = vector.broadcast %15 : vector<16x1xf32> to vector<16x16xf32>
    %17 = arith.subf %13, %16 : vector<16x16xf32>
    %18 = math.exp %17 : vector<16x16xf32>
    %cst_12 = arith.constant dense<0.000000e+00> : vector<16xf32>
    %19 = vector.multi_reduction <add>, %18, %cst_12 [1] : vector<16x16xf32> to vector<16xf32>
    %20 = vector.shape_cast %19 : vector<16xf32> to vector<16x1xf32>
    %21 = vector.broadcast %20 : vector<16x1xf32> to vector<16x16xf32>
    %22 = arith.divf %18, %21 : vector<16x16xf32>
    %23 = arith.truncf %22 : vector<16x16xf32> to vector<16x16xbf16>
    %c0_13 = arith.constant 0 : index
    %c0_14 = arith.constant 0 : index
    %24 = vector.load %arg6[%c0_13, %c0_14] : memref<16x16xbf16, #tpu.memory_space<vmem>>, vector<16x16xbf16>
    tpu.vector_store %arg6[%c0_13, %c0_14], %23 {strides = array<i32>} : memref<16x16xbf16, #tpu.memory_space<vmem>>, vector<16x16xbf16>,
    return
  }
  func.func @transform_0(%arg0: i32) -> (i32, i32) {
    %c0_i32 = arith.constant 0 : i32
    %c0_i32_0 = arith.constant 0 : i32
    return %arg0, %c0_i32 : i32, i32
  }
  func.func @transform_1(%arg0: i32) -> (i32, i32) {
    %c0_i32 = arith.constant 0 : i32
    %c0_i32_0 = arith.constant 0 : i32
    %c0_i32_1 = arith.constant 0 : i32
    return %c0_i32, %c0_i32_0 : i32, i32
  }
  func.func @transform_2(%arg0: i32) -> (i32, i32) {
    %c0_i32 = arith.constant 0 : i32
    %c0_i32_0 = arith.constant 0 : i32
    %c0_i32_1 = arith.constant 0 : i32
    return %c0_i32, %c0_i32_0 : i32, i32
  }
  func.func @transform_3(%arg0: i32) -> (i32, i32) {
    %c0_i32 = arith.constant 0 : i32
    %c0_i32_0 = arith.constant 0 : i32
    %c0_i32_1 = arith.constant 0 : i32
    return %c0_i32, %c0_i32_0 : i32, i32
  }
  func.func @transform_4(%arg0: i32) -> (i32, i32) {
    %c0_i32 = arith.constant 0 : i32
    %c0_i32_0 = arith.constant 0 : i32
    %c0_i32_1 = arith.constant 0 : i32
    return %c0_i32, %c0_i32_0 : i32, i32
  }
  func.func @transform_5(%arg0: i32) -> (i32, i32) {
    %c0_i32 = arith.constant 0 : i32
    %c0_i32_0 = arith.constant 0 : i32
    return %arg0, %c0_i32 : i32, i32
  }
}

</mosaic_0001>

<llo_original>
// kernel: tpu_custom_call.1
$region0: #{tpu_custom_call.1}
  #allocation0 [shape = 'u32[]', space=smem, size = 0x4, offset = 0x4, fixed_abs, tag = 'smem constant byte address 0x4 - core index']
  #allocation1 [shape = 'u32[144,128]{1,0:T(1,128)}', space=vmem, size = 0x12000, scoped, tag = 'internal scratch']
  %s0 = inlined_call_operand.vmem [shape: bf16[16,27], index: 0, kind: input, shape index: {}]
  %s1 = inlined_call_operand.vmem [shape: bf16[27,64], index: 1, kind: input, shape index: {}]
  %s2 = inlined_call_operand.vmem [shape: f32[1,64], index: 2, kind: input, shape index: {}]
  %s3 = inlined_call_operand.vmem [shape: bf16[64,16], index: 3, kind: input, shape index: {}]
  %s4 = inlined_call_operand.vmem [shape: f32[1,16], index: 4, kind: input, shape index: {}]
  %s5 = inlined_call_operand.hbm [shape: bf16[16,16], index: 5, kind: output, shape index: {}]
  %s6 = sld [smem:[#allocation0]]
  $region30: #{tpu_custom_call.1} parent=0
    _
  %s8 = ssub.s32 1, %s6
  %s9 = scalar_select 0, %s8, %s6
  $region1: #{tpu_custom_call.1} parent=0
    #allocation2 [shape = 'u8[4096]{0}', space=vmem, size = 0x1000, scoped, tag = 'output window, operand 0, single buffered']
    #allocation3 [shape = 's32[1]{0}', space=sflag, size = 0x4, scoped, tag = 'scoped memory for tpu_custom_call.1']
    %10 = vsyncpa [#allocation3], 0
    // Predicated region
    $region2: #{tpu_custom_call.1} parent=1 // pred_check
      _
    $region3: #{tpu_custom_call.1} parent=1 // pred_check_branch
      %12 = sbr.rel (0) target = $region5
    $region4: #{tpu_custom_call.1} parent=1 // pred_region
      _
    $region5: #{tpu_custom_call.1} parent=1 // pred_fallthru
      _
    // Predicated region
    $region6: #{tpu_custom_call.1} parent=1 // pred_check
      _
    $region7: #{tpu_custom_call.1} parent=1 // pred_check_branch
      %14 = sbr.rel (0) target = $region9
    $region8: #{tpu_custom_call.1} parent=1 // pred_region
      _
    $region9: #{tpu_custom_call.1} parent=1 // pred_fallthru
      _
    // Predicated region
    $region10: #{tpu_custom_call.1} parent=1 // pred_check
      _
    $region11: #{tpu_custom_call.1} parent=1 // pred_check_branch
      %16 = sbr.rel (0) target = $region13
    $region12: #{tpu_custom_call.1} parent=1 // pred_region
      _
    $region13: #{tpu_custom_call.1} parent=1 // pred_fallthru
      _
    // Predicated region
    $region14: #{tpu_custom_call.1} parent=1 // pred_check
      _
    $region15: #{tpu_custom_call.1} parent=1 // pred_check_branch
      %18 = sbr.rel (0) target = $region17
    $region16: #{tpu_custom_call.1} parent=1 // pred_region
      _
    $region17: #{tpu_custom_call.1} parent=1 // pred_fallthru
      _
    // Predicated region
    $region18: #{tpu_custom_call.1} parent=1 // pred_check
      _
    $region19: #{tpu_custom_call.1} parent=1 // pred_check_branch
      %20 = sbr.rel (0) target = $region21
    $region20: #{tpu_custom_call.1} parent=1 // pred_region
      _
    $region21: #{tpu_custom_call.1} parent=1 // pred_fallthru
      _
    %v22 = vld [vmem:[%s0] sm:$0xf]
    %v23 = vld [vmem:[%s0 + $0x4] sm:$0xf]
    %v24 = vld [vmem:[%s1] sm:$0xf]
    %v25 = vld [vmem:[%s1 + $0x4] sm:$0xf]
    %v26 = vld [vmem:[%s1 + $0x8] sm:$0xf]
    %v27 = vld [vmem:[%s1 + $0xc] sm:$0x3]
    %v28 = vld [vmem:[%s2] sm:$0x1]
    %v30 = vlaneseq
    %v31 = vshrl.u32 %v30, 7
    %v32 = vsub.s32 0, %v31
    %v33 = vrot.slane %v28, %v32
    %v37 = vunpack.c.l.b16 %v22
    %v38 = vunpack.c.l.b16 %v23
    %v39 = vpack.c.b16 %v38, %v37
    %v44 = vunpack.c.l.b16 %v24
    %v45 = vunpack.c.l.b16 %v25
    %v46 = vunpack.c.l.b16 %v26
    %v47 = vunpack.c.l.b16 %v27
    %v48 = vpack.c.b16 %v45, %v44
    %v49 = vpack.c.b16 %v47, %v46
    %vm51 = vcmask 220160
    %v53 = vsel %vm51, %v39, 0
    %vm55 = vcmask 1044480
    %vm56 = vcmask 1045504
    %v57 = vsel %vm55, 4294967295, 65535
    %v58 = vsel %vm56, %v57, 0
    %v60 = vand.u32 %v49, %v58
    %62 = vmatprep.subr.bf16.mxu0 0
    %63 = vmatpush1.bf16.msra.mxu0 %v48
    %64 = vmatprep.subr.bf16.mxu0 0
    %65 = vmatpush1.bf16.msra.mxu0 %v60
    %66 = vmatprep.subr.bf16.mxu0 0
    %67 = vmatpush1.bf16.msra.mxu0 0
    %68 = vmatprep.subr.bf16.mxu0 0
    %69 = vmatpush1.bf16.msra.mxu0 0
    %70 = vmatprep.subr.bf16.mxu0 0
    %71 = vmatpush1.bf16.msra.mxu0 0
    %72 = vmatprep.subr.bf16.mxu0 0
    %73 = vmatpush1.bf16.msra.mxu0 0
    %74 = vmatprep.subr.bf16.mxu0 0
    %75 = vmatpush1.bf16.msra.mxu0 0
    %76 = vmatprep.subr.bf16.mxu0 0
    %77 = vmatpush1.bf16.msra.mxu0 0
    %78 = vmatprep.subr.bf16.mxu0 0
    %79 = vmatpush1.bf16.msra.mxu0 0
    %80 = vmatprep.subr.bf16.mxu0 0
    %81 = vmatpush1.bf16.msra.mxu0 0
    %82 = vmatprep.subr.bf16.mxu0 0
    %83 = vmatpush1.bf16.msra.mxu0 0
    %84 = vmatprep.subr.bf16.mxu0 0
    %85 = vmatpush1.bf16.msra.mxu0 0
    %86 = vmatprep.subr.bf16.mxu0 0
    %87 = vmatpush1.bf16.msra.mxu0 0
    %88 = vmatprep.subr.bf16.mxu0 0
    %89 = vmatpush1.bf16.msra.mxu0 0
    %90 = vmatprep.subr.bf16.mxu0 0
    %91 = vmatpush1.bf16.msra.mxu0 0
    %92 = vmatprep.subr.bf16.mxu0 0
    %93 = vmatpush1.bf16.msra.mxu0 0
    %94 = vmatprep.mubr.bf16.mxu0 0
    %95 = vmatmul.mubr.bf16.gmra.mrb[0].mxu0 %v53
    %v96 = vpop.f32.mrb[0].mxu0
    %v97 = vadd.f32 %v33, %v96
    %v98 = vpop.f32.mrb[0].mxu0
    %v99 = vpop.f32.mrb[0].mxu0
    %v100 = vadd.f32 %v33, %v99
    %v101 = vpop.f32.mrb[0].mxu0
    %102 = vdwg.mxu0
    %v103 = vmax.f32 %v97, 0.0
    %v104 = vmax.f32 %v100, 0.0
    %v105 = vpack.c.bf16 %v104, %v103
    %v106 = vld [vmem:[%s3] sm:$0xf]
    %v107 = vld [vmem:[%s3 + $0x4] sm:$0xf]
    %v108 = vld [vmem:[%s3 + $0x8] sm:$0xf]
    %v109 = vld [vmem:[%s3 + $0xc] sm:$0xf]
    %v110 = vld [vmem:[%s3 + $0x10] sm:$0xf]
    %v111 = vld [vmem:[%s3 + $0x14] sm:$0xf]
    %v112 = vld [vmem:[%s3 + $0x18] sm:$0xf]
    %v113 = vld [vmem:[%s3 + $0x1c] sm:$0xf]
    %v114 = vld [vmem:[%s4] sm:$0x1]
    %v116 = vlaneseq
    %v117 = vshrl.u32 %v116, 7
    %v118 = vsub.s32 0, %v117
    %v119 = vrot.slane %v114, %v118
    %v129 = vunpack.c.l.b16 %v106
    %v130 = vunpack.c.l.b16 %v107
    %v131 = vunpack.c.l.b16 %v108
    %v132 = vunpack.c.l.b16 %v109
    %v133 = vunpack.c.l.b16 %v110
    %v134 = vunpack.c.l.b16 %v111
    %v135 = vunpack.c.l.b16 %v112
    %v136 = vunpack.c.l.b16 %v113
    %v137 = vpack.c.b16 %v130, %v129
    %v138 = vpack.c.b16 %v132, %v131
    %v139 = vpack.c.b16 %v134, %v133
    %v140 = vpack.c.b16 %v136, %v135
    %vm145 = vcmask 523264
    %v147 = vsel %vm145, %v105, 0
    %149 = vmatprep.subr.bf16.mxu0 0
    %150 = vmatpush1.bf16.msra.mxu0 %v137
    %151 = vmatprep.subr.bf16.mxu0 0
    %152 = vmatpush1.bf16.msra.mxu0 %v138
    %153 = vmatprep.subr.bf16.mxu0 0
    %154 = vmatpush1.bf16.msra.mxu0 %v139
    %155 = vmatprep.subr.bf16.mxu0 0
    %156 = vmatpush1.bf16.msra.mxu0 %v140
    %157 = vmatprep.subr.bf16.mxu0 0
    %158 = vmatpush1.bf16.msra.mxu0 0
    %159 = vmatprep.subr.bf16.mxu0 0
    %160 = vmatpush1.bf16.msra.mxu0 0
    %161 = vmatprep.subr.bf16.mxu0 0
    %162 = vmatpush1.bf16.msra.mxu0 0
    %163 = vmatprep.subr.bf16.mxu0 0
    %164 = vmatpush1.bf16.msra.mxu0 0
    %165 = vmatprep.subr.bf16.mxu0 0
    %166 = vmatpush1.bf16.msra.mxu0 0
    %167 = vmatprep.subr.bf16.mxu0 0
    %168 = vmatpush1.bf16.msra.mxu0 0
    %169 = vmatprep.subr.bf16.mxu0 0
    %170 = vmatpush1.bf16.msra.mxu0 0
    %171 = vmatprep.subr.bf16.mxu0 0
    %172 = vmatpush1.bf16.msra.mxu0 0
    %173 = vmatprep.subr.bf16.mxu0 0
    %174 = vmatpush1.bf16.msra.mxu0 0
    %175 = vmatprep.subr.bf16.mxu0 0
    %176 = vmatpush1.bf16.msra.mxu0 0
    %177 = vmatprep.subr.bf16.mxu0 0
    %178 = vmatpush1.bf16.msra.mxu0 0
    %179 = vmatprep.subr.bf16.mxu0 0
    %180 = vmatpush1.bf16.msra.mxu0 0
    %181 = vmatprep.mubr.bf16.mxu0 0
    %182 = vmatmul.mubr.bf16.gmra.mrb[0].mxu0 %v147
    %v183 = vpop.f32.mrb[0].mxu0
    %v184 = vadd.f32 %v119, %v183
    %v185 = vpop.f32.mrb[0].mxu0
    %v186 = vpop.f32.mrb[0].mxu0
    %v187 = vadd.f32 %v119, %v186
    %v188 = vpop.f32.mrb[0].mxu0
    %189 = vdwg.mxu0
    %vm190 = vcmask 130048
    %v191 = vsel %vm190, %v184, -inf
    %192 = vmax.xlane.f32.xlu0 %v191
    %v193 = vpop.xlane.xlu0 %192
    %v194 = vsel %vm190, %v187, -inf
    %195 = vmax.xlane.f32.xlu0 %v194
    %v196 = vpop.xlane.xlu0 %195
    %v197 = vsub.f32 %v184, %v193
    %v198 = vsub.f32 %v187, %v196
    %v199 = vmul.f32 %v197, 1.442695
    %v200 = vpow.pop %v199
    %v201 = vmul.f32 %v198, 1.442695
    %v202 = vpow.pop %v201
    %v203 = vsel %vm190, %v200, 0.0
    %204 = vadd.xlane.f32.xlu0 %v203
    %v205 = vpop.xlane.xlu0 %204
    %v206 = vsel %vm190, %v202, 0.0
    %207 = vadd.xlane.f32.xlu0 %v206
    %v208 = vpop.xlane.xlu0 %207
    %v209 = vrcp.pop %v205
    %v210 = vmul.f32 %v200, %v209
    %v211 = vrcp.pop %v208
    %v212 = vmul.f32 %v202, %v211
    %v213 = vpack.c.bf16 %v212, %v210
    %v215 = vunpack.c.l.b16 %v213
    %v216 = vunpack.c.h.b16 %v213
    %v217 = vpack.c.b16 %v215, %v215
    %v218 = vpack.c.b16 %v216, %v216
    %vm221 = vcmask 125952
    %222 = vst.msk [vmem:[#allocation2] sm:$0xf] %vm221, %v217
    %223 = vst.msk [vmem:[#allocation2 + $0x4] sm:$0xf] %vm221, %v218
    // Predicated region
    $region22: #{tpu_custom_call.1} parent=1 // pred_check
      _
    $region23: #{tpu_custom_call.1} parent=1 // pred_check_branch
      %225 = sbr.rel (0) target = $region25
    $region24: #{tpu_custom_call.1} parent=1 // pred_region
      %s227 = ssub.s32 128, 128
      %228 = vsyncadd [#allocation3], %s227
      %s229 = sshll.u32 [#allocation2], 4
      %s230 = int_to_ptr.vmem [resolvable:$true] %s229
      %235 = dma.vmem_to_hbm [thread:$0]  %s230, 128, %s5, [#allocation3], 64, 64, 4
    $region25: #{tpu_custom_call.1} parent=1 // pred_fallthru
      _
    // Predicated region
    $region26: #{tpu_custom_call.1} parent=1 // pred_check
      _
    $region27: #{tpu_custom_call.1} parent=1 // pred_check_branch
      %237 = sbr.rel (0) target = $region29
    $region28: #{tpu_custom_call.1} parent=1 // pred_region
      %238 = dma.done [#allocation3], 128
    $region29: #{tpu_custom_call.1} parent=1 // pred_fallthru
      _
    %239 = vsyncpa [#allocation3], 1

</llo_original>
